<compile_context>
chip_gen: v7x
topology: tpu7x:2x2x1
jax: 0.10.0
libtpu: 0.0.40
codegen_flags: <defaults>
</compile_context>

<pallas_src>
import math

import jax
import jax.numpy as jnp
from jax.experimental import pallas as pl
from jax.experimental.pallas import tpu as pltpu


# Below this slab size a single whole-array block is used (splitting a ~1 µs
# kernel across grid steps only adds the ~0.35 µs/step overhead).
_SINGLE_BLOCK_BYTES = 2 * 1024 * 1024

# Candidate lane widths (widest first): wide lane-dense blocks give unmasked
# full-lane vector stores and fewer, larger contiguous DMA descriptors.
_LANE_CANDIDATES = (4096, 2048, 1024, 512, 256, 128)

# Never let the kernel's total VMEM footprint exceed this, regardless of what
# get_tpu_info reports (safe on v7x's 64 MiB per-TC VMEM).
_MAX_FOOTPRINT_BYTES = 48 * 1024 * 1024


def _min_sublane(dtype) -> int:
    # f32 -> 8, bf16 -> 16, int8/fp8 -> 32 (sub-32-bit dtypes pack sublanes).
    itemsize = jnp.dtype(dtype).itemsize
    return 8 * max(1, 4 // max(1, itemsize))


def _vmem_footprint_cap() -> int:
    """Generation-aware cap on this kernel's total VMEM usage (bytes)."""
    try:
        info = pltpu.get_tpu_info()
        cap = int(getattr(info, "vmem_capacity_bytes", 0)) or (64 * 1024 * 1024)
    except Exception:  # no TPU info available -> be conservative (v7x-sized)
        cap = 64 * 1024 * 1024
    # Use at most half the physical per-core VMEM, hard-capped at 48 MiB.
    #   v5e/v6e (128 MiB) -> 48 MiB footprint;  v7x (64 MiB) -> 32 MiB.
    return min(cap // 2, _MAX_FOOTPRINT_BYTES)


def _make_scaler_kernel(inv: float):
    def kernel(x_ref, o_ref):
        # y = x * (1 / rate).  `inv` is a trace-time Python float inlined as a
        # constant; multiply stays in the native dtype (kernel is HBM-bound,
        # the VALU never saturates, so no dtype upgrade tricks).
        o_ref[...] = (x_ref[...] * inv).astype(o_ref.dtype)
    return kernel


def _scaler_pallas_2d(x2d, inv: float):
    rows, lane = x2d.shape
    itemsize = jnp.dtype(x2d.dtype).itemsize
    slab_bytes = rows * lane * itemsize
    sub = _min_sublane(x2d.dtype)
    row_bytes = lane * itemsize

    footprint_cap = _vmem_footprint_cap()
    # Double-buffered input + output is ~4x the block; keep ~20% headroom.
    block_budget = max(row_bytes, footprint_cap // 5)

    if slab_bytes <= _SINGLE_BLOCK_BYTES or rows < 2 * sub:
        # Whole array as a single block: block_shape == full array dims is
        # always legal (no (8,128) divisibility requirement).
        block_rows = rows
    else:
        # Largest sublane-aligned block under the VMEM budget ...
        cap_rows = max(sub, (block_budget // row_bytes) // sub * sub)
        # ... but force >= 2 grid steps so both v7x TensorCores get work.
        half_rows = max(sub, ((rows + 1) // 2) // sub * sub)
        block_rows = min(cap_rows, half_rows, rows)
        # (rows need not be a multiple of block_rows: Pallas masks the ragged
        #  last block, since block_rows is a sublane multiple.)

    grid = (pl.cdiv(rows, block_rows),)
    n = rows * lane
    return pl.pallas_call(
        _make_scaler_kernel(inv),
        out_shape=jax.ShapeDtypeStruct((rows, lane), x2d.dtype),
        grid=grid,
        in_specs=[pl.BlockSpec((block_rows, lane), lambda i: (i, 0))],
        out_specs=pl.BlockSpec((block_rows, lane), lambda i: (i, 0)),
        compiler_params=pltpu.CompilerParams(
            dimension_semantics=("parallel",),  # lets v7x's 2 TCs split rows
            vmem_limit_bytes=footprint_cap,
            allow_input_fusion=[True],  # let XLA fuse an elementwise producer
        ),
        # Mem-bound, near-zero-flop hint for XLA's scheduler.
        cost_estimate=pl.CostEstimate(
            flops=n, transcendentals=0, bytes_accessed=2 * n * itemsize),
    )(x2d)


def scaler_forward(x, rate: float):
    """y = x / rate, implemented as x * (1/rate) in a Pallas kernel."""
    if rate == 1.0:
        return x
    inv = 1.0 / float(rate)

    total = math.prod(x.shape) if x.shape else 1
    lane = next((c for c in _LANE_CANDIDATES if total % c == 0), None)
    if lane is None:
        # TODO(synk): lane-unaligned element count; plain XLA elementwise fallback.
        return (x * inv).astype(x.dtype)

    rows = total // lane
    x2d = x.reshape(rows, lane)
    y2d = _scaler_pallas_2d(x2d, inv)
    return y2d.reshape(x.shape)


class Scaler:
    """JAX/Pallas equivalent of the PyTorch Scaler module."""

    def __init__(self, rate, scale):
        # Mirrors __init__: rate is only used when `scale` is True.
        self.rate = float(rate) if scale else 1.0
        self.training = True  # matches nn.Module default mode

    def __call__(self, x):
        if not self.training:
            return x  # identity in eval mode (exact PyTorch semantics)
        return scaler_forward(x, self.rate)


if __name__ == "__main__":
    key = jax.random.PRNGKey(0)
    k1, k2, k3 = jax.random.split(key, 3)

    scaler = Scaler(rate=0.5, scale=True)  # training mode -> divide by rate

    # Small NCHW feature map (single-block path).
    x_small = jax.random.normal(k1, (2, 4, 16, 16), dtype=jnp.float32)
    y_small = jax.block_until_ready(scaler(x_small))
    assert jnp.allclose(y_small, x_small / 0.5, atol=1e-6, rtol=1e-6), \
        "mismatch vs reference (small f32)"

    # Larger feature map exercising the multi-grid-step (>=2 steps) path.
    x_big = jax.random.normal(k2, (8, 32, 64, 64), dtype=jnp.float32)
    y_big = jax.block_until_ready(scaler(x_big))
    assert jnp.allclose(y_big, x_big / 0.5, atol=1e-6, rtol=1e-6), \
        "mismatch vs reference (big f32)"

    # bf16 activations (half the HBM traffic for a purely mem-bound op).
    x_bf16 = jax.random.normal(k3, (2, 4, 16, 16), dtype=jnp.bfloat16)
    y_bf16 = jax.block_until_ready(scaler(x_bf16))
    assert jnp.allclose(y_bf16.astype(jnp.float32),
                        x_bf16.astype(jnp.float32) * 2.0,
                        atol=1e-2, rtol=1e-2), "mismatch vs reference (bf16)"

    # Eval mode is identity.
    scaler.training = False
    y_eval = jax.block_until_ready(scaler(x_small))
    assert jnp.array_equal(y_eval, x_small)

    # scale=False => rate == 1 => identity values even in training mode.
    scaler_noscale = Scaler(rate=0.5, scale=False)
    y_noscale = jax.block_until_ready(scaler_noscale(x_small))
    assert jnp.array_equal(y_noscale, x_small)

    print("KERNEL_OK")
</pallas_src>

<mosaic_0001>
module attributes {stable_mosaic.version = 11 : i64} {
  func.func @kernel(%arg0: i32, %arg1: memref<1x2048xf32, #tpu.memory_space<vmem>>, %arg2: memref<1x2048xf32, #tpu.memory_space<vmem>>) attributes {dimension_semantics = [#tpu.dimension_semantics<parallel>], iteration_bounds = array<i64: 1>, scalar_prefetch = 0 : i64, scratch_operands = 0 : i64, tpu.core_type = #tpu.core_type<tc>, window_params = [{transform_indices = @transform_0, window_bounds = array<i64: 1, 2048>}, {transform_indices = @transform_1, window_bounds = array<i64: 1, 2048>}]} {
    %c0 = arith.constant 0 : index
    %c0_0 = arith.constant 0 : index
    %0 = vector.load %arg1[%c0, %c0_0] : memref<1x2048xf32, #tpu.memory_space<vmem>>, vector<1x2048xf32>
    %cst = arith.constant 2.000000e+00 : f32
    %1 = vector.broadcast %cst : f32 to vector<1x2048xf32>
    %2 = arith.mulf %0, %1 : vector<1x2048xf32>
    %c0_1 = arith.constant 0 : index
    %c0_2 = arith.constant 0 : index
    %3 = vector.load %arg2[%c0_1, %c0_2] : memref<1x2048xf32, #tpu.memory_space<vmem>>, vector<1x2048xf32>
    tpu.vector_store %arg2[%c0_1, %c0_2], %2 {strides = array<i32>} : memref<1x2048xf32, #tpu.memory_space<vmem>>, vector<1x2048xf32>,
    return
  }
  func.func @transform_0(%arg0: i32) -> (i32, i32) {
    %c0_i32 = arith.constant 0 : i32
    %c0_i32_0 = arith.constant 0 : i32
    return %arg0, %c0_i32 : i32, i32
  }
  func.func @transform_1(%arg0: i32) -> (i32, i32) {
    %c0_i32 = arith.constant 0 : i32
    %c0_i32_0 = arith.constant 0 : i32
    return %arg0, %c0_i32 : i32, i32
  }
}

</mosaic_0001>

<llo_original>
// kernel: tpu_custom_call.1
$region0: #{tpu_custom_call.1}
  #allocation0 [shape = 'u32[]', space=smem, size = 0x4, offset = 0x4, fixed_abs, tag = 'smem constant byte address 0x4 - core index']
  #allocation1 [shape = 'u32[144,128]{1,0:T(1,128)}', space=vmem, size = 0x12000, scoped, tag = 'internal scratch']
  %s0 = inlined_call_operand.hbm [shape: f32[1,2048], index: 0, kind: input, shape index: {}]
  %s1 = inlined_call_operand.hbm [shape: f32[1,2048], index: 1, kind: output, shape index: {}]
  %s2 = sld [smem:[#allocation0]]
  $region18: #{tpu_custom_call.1} parent=0
    _
  %s4 = ssub.s32 1, %s2
  %s5 = scalar_select 0, %s4, %s2
  $region1: #{tpu_custom_call.1} parent=0
    #allocation2 [shape = 'u8[8192]{0}', space=vmem, size = 0x2000, scoped, tag = 'input window, operand 0, single buffered']
    #allocation3 [shape = 's32[1]{0}', space=sflag, size = 0x4, scoped, tag = 'scoped memory for tpu_custom_call.1']
    #allocation4 [shape = 's32[1]{0}', space=sflag, size = 0x4, scoped, tag = 'scoped memory for tpu_custom_call.1']
    #allocation5 [shape = 'u8[8192]{0}', space=vmem, size = 0x2000, scoped, tag = 'output window, operand 0, single buffered']
    %6 = vsyncpa [#allocation3], 0
    %7 = vsyncpa [#allocation4], 0
    // Predicated region
    $region2: #{tpu_custom_call.1} parent=1 // pred_check
      _
    $region3: #{tpu_custom_call.1} parent=1 // pred_check_branch
      %9 = sbr.rel (0) target = $region5
    $region4: #{tpu_custom_call.1} parent=1 // pred_region
      %s11 = ssub.s32 256, 256
      %12 = vsyncadd [#allocation3], %s11
      %s14 = sshll.u32 [#allocation2], 4
      %s15 = int_to_ptr.vmem [resolvable:$true] %s14
      %17 = dma.hbm_to_vmem [thread:$0]  %s0, 256, %s15, [#allocation3]
    $region5: #{tpu_custom_call.1} parent=1 // pred_fallthru
      _
    // Predicated region
    $region6: #{tpu_custom_call.1} parent=1 // pred_check
      _
    $region7: #{tpu_custom_call.1} parent=1 // pred_check_branch
      %19 = sbr.rel (0) target = $region9
    $region8: #{tpu_custom_call.1} parent=1 // pred_region
      %20 = dma.done [#allocation3], 256
    $region9: #{tpu_custom_call.1} parent=1 // pred_fallthru
      _
    %v21 = vld [vmem:[#allocation2] sm:$0xff]
    %v22 = vld [vmem:[#allocation2 + $0x8] sm:$0xff]
    %v23 = vmul.f32 %v21, 2.0
    %v24 = vmul.f32 %v22, 2.0
    %25 = vst [vmem:[#allocation5] sm:$0xff] %v23
    %26 = vst [vmem:[#allocation5 + $0x8] sm:$0xff] %v24
    // Predicated region
    $region10: #{tpu_custom_call.1} parent=1 // pred_check
      _
    $region11: #{tpu_custom_call.1} parent=1 // pred_check_branch
      %28 = sbr.rel (0) target = $region13
    $region12: #{tpu_custom_call.1} parent=1 // pred_region
      %s30 = ssub.s32 256, 256
      %31 = vsyncadd [#allocation4], %s30
      %s33 = sshll.u32 [#allocation5], 4
      %s34 = int_to_ptr.vmem [resolvable:$true] %s33
      %36 = dma.vmem_to_hbm [thread:$0]  %s34, 256, %s1, [#allocation4]
    $region13: #{tpu_custom_call.1} parent=1 // pred_fallthru
      _
    // Predicated region
    $region14: #{tpu_custom_call.1} parent=1 // pred_check
      _
    $region15: #{tpu_custom_call.1} parent=1 // pred_check_branch
      %38 = sbr.rel (0) target = $region17
    $region16: #{tpu_custom_call.1} parent=1 // pred_region
      %39 = dma.done [#allocation4], 256
    $region17: #{tpu_custom_call.1} parent=1 // pred_fallthru
      _
    %40 = vsyncpa [#allocation3], 1
    %41 = vsyncpa [#allocation4], 1

</llo_original>
